<compile_context>
chip_gen: v7x
topology: tpu7x:2x2x1
jax: 0.10.0
libtpu: 0.0.40
codegen_flags: <defaults>
</compile_context>

<pallas_src>
import jax
import jax.numpy as jnp
from jax.experimental import pallas as pl
from jax.experimental.pallas import tpu as pltpu


def _sim_classifier_kernel(emb_n_ref, x_ref, out_ref):
    x = x_ref[...]                                        # (TN, D), native dtype
    emb_n = emb_n_ref[...]                                # (C, D), pre-scaled 100*normalize

    # Lane-dense similarity: contract over D (last dim of both operands),
    # output (C, TN) so the big N axis lands on the 128 lanes. f32 MXU acc.
    sim_raw = jax.lax.dot_general(
        emb_n, x,
        dimension_numbers=(((1,), (1,)), ((), ())),
        preferred_element_type=jnp.float32)               # (C, TN)

    # Per-row sum of squares of x, produced directly in lane orientation
    # (1, TN) via a ones-row matmul (MXU) -> no transpose / relayout needed.
    # Stays in x's native dtype (bf16 x => bf16 xsq temp), f32 accumulation.
    xsq = x * x                                           # (TN, D)
    ones_row = jnp.ones((1, x.shape[-1]), x.dtype)        # (1, D)
    x_sumsq = jax.lax.dot_general(
        ones_row, xsq,
        dimension_numbers=(((1,), (1,)), ((), ())),
        preferred_element_type=jnp.float32)               # (1, TN)

    # Fold x's L2 normalization to after the matmul: rsqrt (EUP) + one mul
    # per output element (C*TN) instead of N*D divides.
    out_ref[...] = (sim_raw * jax.lax.rsqrt(x_sumsq)).astype(out_ref.dtype)


def _pick_tile_n(n: int, d: int, itemsize: int) -> int:
    """Pick the N-tile: big blocks to amortize per-step overhead, but keep
    >= 2 grid steps for medium/large N (v7x 2-TC split) and keep the
    double-buffered x blocks + xsq temp inside VMEM on all chips."""
    if n <= 256:
        # Single block covering the full N dim is always a legal block shape;
        # splitting this small would only add per-step overhead.
        return n
    per_row_bytes = max(1, d * itemsize)
    budget_bytes = 8 * 1024 * 1024          # ~8 MiB per x block
    tn = budget_bytes // per_row_bytes
    tn = max(128, min(4096, tn))
    # Keep at least 2 grid steps so the "parallel" N axis can shard across
    # the two TensorCores on v7x (no-op penalty on single-TC v5e/v6e).
    half = -(-((n + 1) // 2) // 128) * 128
    tn = min(tn, half)
    # Output block last dim is TN -> must be a multiple of 128 when TN != N.
    return max(128, (tn // 128) * 128)


def sim_classifier(embeddings: jax.Array, x: jax.Array, *, tile_n=None) -> jax.Array:
    """Pallas implementation of SimClassifier.forward.

    embeddings: (C, D) parameter matrix.
    x:          (N, D) (or (D,)) image features.
    returns:    squeeze(100 * normalize(x) @ normalize(embeddings).T)
    """
    embeddings = jnp.asarray(embeddings)
    x = jnp.asarray(x)
    if x.ndim == 1:
        x = x[None, :]

    C, D = embeddings.shape
    N, D2 = x.shape
    assert D == D2, "feature dims must match"

    # Hoisted out of the per-step kernel body (parameter-sized, reused across
    # grid steps): normalize embeddings with rsqrt and fold the 100x scale in.
    emb_f32 = embeddings.astype(jnp.float32)
    emb_scale = 100.0 * jax.lax.rsqrt(
        jnp.sum(emb_f32 * emb_f32, axis=-1, keepdims=True))     # (C, 1)
    emb_n = (emb_f32 * emb_scale).astype(x.dtype)               # (C, D)

    if tile_n is None:
        tile_n = _pick_tile_n(N, D, x.dtype.itemsize)
    grid_n = pl.cdiv(N, tile_n)

    # VMEM footprint estimate: 2x double-buffered x blocks + ~2x-worth of
    # temporaries (xsq, etc.) + double-buffered output + resident embeddings.
    x_block_bytes = tile_n * D * x.dtype.itemsize
    vmem_est = (2 * x_block_bytes              # pipelined x input
                + 2 * x_block_bytes            # xsq / misc temporaries
                + 2 * C * tile_n * 4           # pipelined f32 output
                + 2 * C * D * emb_n.dtype.itemsize)
    # Headroom, capped well below v7x's 64 MiB physical VMEM (128 MiB on
    # v5e/v6e so this is always safe).
    vmem_limit = int(min(56 * 1024 * 1024,
                         max(32 * 1024 * 1024, vmem_est + (8 << 20))))

    out = pl.pallas_call(
        _sim_classifier_kernel,
        out_shape=jax.ShapeDtypeStruct((C, N), jnp.float32),
        grid=(grid_n,),
        in_specs=[
            # Pre-normalized embeddings stay resident (same block every step).
            pl.BlockSpec((C, D), lambda i: (0, 0)),
            # Stream x over N (double-buffered by the Pallas pipeline).
            pl.BlockSpec((tile_n, D), lambda i: (i, 0)),
        ],
        # Lane-dense output blocks: last dim is the streamed N axis.
        out_specs=pl.BlockSpec((C, tile_n), lambda i: (0, i)),
        compiler_params=pltpu.CompilerParams(
            dimension_semantics=("parallel",),   # shard N across TCs on v7x
            vmem_limit_bytes=vmem_limit,
        ),
    )(emb_n, x)

    # (C, N) -> (N, C) (tiny wrapper-side transpose), then torch-style squeeze.
    return jnp.squeeze(out.T)


if __name__ == "__main__":
    key = jax.random.PRNGKey(0)
    k_emb, k_x = jax.random.split(key)

    # Q16 uses 2 prompt embeddings; CLIP-style (lane-aligned) feature dim.
    C, D, N = 2, 512, 8
    embeddings = jax.random.normal(k_emb, (C, D), dtype=jnp.float32)
    x = jax.random.normal(k_x, (N, D), dtype=jnp.float32)

    def ref_fn(emb, feats):
        emb_n = emb / jnp.linalg.norm(emb, axis=-1, keepdims=True)
        f_n = feats / jnp.linalg.norm(feats, axis=-1, keepdims=True)
        return jnp.squeeze(100.0 * f_n @ emb_n.T)

    # 1) Small single-block case.
    sim = jax.block_until_ready(sim_classifier(embeddings, x))
    ref = ref_fn(embeddings, x)
    assert sim.shape == ref.shape
    assert jnp.allclose(sim, ref, atol=1e-3, rtol=1e-3)

    # 2) Tiled path with a partial last tile (N not a multiple of tile_n).
    N2 = 300   # > 256 -> auto tile 256, grid=(2,), last block has 44 rows
    x2 = jax.random.normal(jax.random.PRNGKey(1), (N2, D), dtype=jnp.float32)
    sim2 = jax.block_until_ready(sim_classifier(embeddings, x2))
    ref2 = ref_fn(embeddings, x2)
    assert sim2.shape == ref2.shape
    assert jnp.allclose(sim2, ref2, atol=1e-3, rtol=1e-3)

    # 3) Explicit small-tile multi-step grid (resident embeddings across steps).
    sim3 = jax.block_until_ready(sim_classifier(embeddings, x2, tile_n=128))
    assert jnp.allclose(sim3, ref2, atol=1e-3, rtol=1e-3)

    # 4) Single feature vector (torch .squeeze() drops the batch dim).
    xv = x[0]
    simv = jax.block_until_ready(sim_classifier(embeddings, xv))
    refv = ref_fn(embeddings, xv[None, :])
    assert simv.shape == (C,)
    assert jnp.allclose(simv, refv, atol=1e-3, rtol=1e-3)

    print("KERNEL_OK")
</pallas_src>

<mosaic_0001>
module attributes {stable_mosaic.version = 11 : i64} {
  func.func @_sim_classifier_kernel(%arg0: i32, %arg1: memref<2x512xf32, #tpu.memory_space<vmem>>, %arg2: memref<8x512xf32, #tpu.memory_space<vmem>>, %arg3: memref<2x8xf32, #tpu.memory_space<vmem>>) attributes {dimension_semantics = [#tpu.dimension_semantics<parallel>], iteration_bounds = array<i64: 1>, scalar_prefetch = 0 : i64, scratch_operands = 0 : i64, tpu.core_type = #tpu.core_type<tc>, window_params = [{pipeline_mode = #tpu.pipeline_mode<synchronous>, transform_indices = @transform_0, window_bounds = array<i64: 2, 512>}, {transform_indices = @transform_1, window_bounds = array<i64: 8, 512>}, {transform_indices = @transform_2, window_bounds = array<i64: 2, 8>}]} {
    %c0 = arith.constant 0 : index
    %c0_0 = arith.constant 0 : index
    %0 = vector.load %arg2[%c0, %c0_0] : memref<8x512xf32, #tpu.memory_space<vmem>>, vector<8x512xf32>
    %c0_1 = arith.constant 0 : index
    %c0_2 = arith.constant 0 : index
    %1 = vector.load %arg1[%c0_1, %c0_2] : memref<2x512xf32, #tpu.memory_space<vmem>>, vector<2x512xf32>
    %cst = arith.constant dense<0.000000e+00> : vector<2x8xf32>
    %2 = tpu.matmul %1, %0, %cst {dimension_numbers = #tpu.dot_dimension_numbers<[1], [1], [0], [0], [0, 0, 1, 0], [], []>} : vector<2x512xf32>, vector<8x512xf32>, vector<2x8xf32> -> vector<2x8xf32>
    %3 = arith.mulf %0, %0 : vector<8x512xf32>
    %cst_3 = arith.constant 1.000000e+00 : f32
    %4 = vector.broadcast %cst_3 : f32 to vector<1x512xf32>
    %cst_4 = arith.constant dense<0.000000e+00> : vector<1x8xf32>
    %5 = tpu.matmul %4, %3, %cst_4 {dimension_numbers = #tpu.dot_dimension_numbers<[1], [1], [0], [0], [0, 0, 1, 0], [], []>} : vector<1x512xf32>, vector<8x512xf32>, vector<1x8xf32> -> vector<1x8xf32>
    %6 = math.rsqrt %5 : vector<1x8xf32>
    %7 = vector.broadcast %6 : vector<1x8xf32> to vector<2x8xf32>
    %8 = arith.mulf %2, %7 : vector<2x8xf32>
    %c0_5 = arith.constant 0 : index
    %c0_6 = arith.constant 0 : index
    %9 = vector.load %arg3[%c0_5, %c0_6] : memref<2x8xf32, #tpu.memory_space<vmem>>, vector<2x8xf32>
    tpu.vector_store %arg3[%c0_5, %c0_6], %8 {strides = array<i32>} : memref<2x8xf32, #tpu.memory_space<vmem>>, vector<2x8xf32>,
    return
  }
  func.func @transform_0(%arg0: i32) -> (i32, i32) {
    %c0_i32 = arith.constant 0 : i32
    %c0_i32_0 = arith.constant 0 : i32
    %c0_i32_1 = arith.constant 0 : i32
    return %c0_i32, %c0_i32_0 : i32, i32
  }
  func.func @transform_1(%arg0: i32) -> (i32, i32) {
    %c0_i32 = arith.constant 0 : i32
    %c0_i32_0 = arith.constant 0 : i32
    return %arg0, %c0_i32 : i32, i32
  }
  func.func @transform_2(%arg0: i32) -> (i32, i32) {
    %c0_i32 = arith.constant 0 : i32
    %c0_i32_0 = arith.constant 0 : i32
    return %c0_i32, %arg0 : i32, i32
  }
}

</mosaic_0001>

<llo_original>
// kernel: tpu_custom_call.1
$region0: #{tpu_custom_call.1}
  #allocation0 [shape = 'u32[]', space=smem, size = 0x4, offset = 0x4, fixed_abs, tag = 'smem constant byte address 0x4 - core index']
  #allocation1 [shape = 'u32[144,128]{1,0:T(1,128)}', space=vmem, size = 0x12000, scoped, tag = 'internal scratch']
  %s0 = inlined_call_operand.hbm [shape: f32[2,512], index: 0, kind: input, shape index: {}]
  %s1 = inlined_call_operand.hbm [shape: f32[8,512], index: 1, kind: input, shape index: {}]
  %s2 = inlined_call_operand.hbm [shape: f32[2,8], index: 2, kind: output, shape index: {}]
  %s3 = sld [smem:[#allocation0]]
  $region26: #{tpu_custom_call.1} parent=0
    _
  %s5 = ssub.s32 1, %s3
  %s6 = scalar_select 0, %s5, %s3
  $region1: #{tpu_custom_call.1} parent=0
    #allocation2 [shape = 'u8[4096]{0}', space=vmem, size = 0x1000, scoped, tag = 'input window, operand 0, single buffered']
    #allocation3 [shape = 's32[1]{0}', space=sflag, size = 0x4, scoped, tag = 'scoped memory for tpu_custom_call.1']
    #allocation4 [shape = 's32[1]{0}', space=sflag, size = 0x4, scoped, tag = 'scoped memory for tpu_custom_call.1']
    #allocation5 [shape = 'u8[16384]{0}', space=vmem, size = 0x4000, scoped, tag = 'input window, operand 1, single buffered']
    #allocation6 [shape = 's32[1]{0}', space=sflag, size = 0x4, scoped, tag = 'scoped memory for tpu_custom_call.1']
    #allocation7 [shape = 'u8[1024]{0}', space=vmem, size = 0x400, scoped, tag = 'output window, operand 0, single buffered']
    %7 = vsyncpa [#allocation3], 0
    %8 = vsyncpa [#allocation6], 0
    %9 = vsyncpa [#allocation4], 0
    // Predicated region
    $region2: #{tpu_custom_call.1} parent=1 // pred_check
      _
    $region3: #{tpu_custom_call.1} parent=1 // pred_check_branch
      %11 = sbr.rel (0) target = $region5
    $region4: #{tpu_custom_call.1} parent=1 // pred_region
      %s13 = ssub.s32 128, 128
      %14 = vsyncadd [#allocation3], %s13
      %s16 = sshll.u32 [#allocation2], 4
      %s17 = int_to_ptr.vmem [resolvable:$true] %s16
      %19 = dma.hbm_to_vmem [thread:$0]  %s0, 128, %s17, [#allocation3]
    $region5: #{tpu_custom_call.1} parent=1 // pred_fallthru
      _
    // Predicated region
    $region6: #{tpu_custom_call.1} parent=1 // pred_check
      _
    $region7: #{tpu_custom_call.1} parent=1 // pred_check_branch
      %21 = sbr.rel (0) target = $region9
    $region8: #{tpu_custom_call.1} parent=1 // pred_region
      %s23 = ssub.s32 512, 512
      %24 = vsyncadd [#allocation6], %s23
      %s26 = sshll.u32 [#allocation5], 4
      %s27 = int_to_ptr.vmem [resolvable:$true] %s26
      %29 = dma.hbm_to_vmem [thread:$0]  %s1, 512, %s27, [#allocation6]
    $region9: #{tpu_custom_call.1} parent=1 // pred_fallthru
      _
    // Predicated region
    $region10: #{tpu_custom_call.1} parent=1 // pred_check
      _
    $region11: #{tpu_custom_call.1} parent=1 // pred_check_branch
      %31 = sbr.rel (0) target = $region13
    $region12: #{tpu_custom_call.1} parent=1 // pred_region
      %32 = dma.done [#allocation3], 128
    $region13: #{tpu_custom_call.1} parent=1 // pred_fallthru
      _
    // Predicated region
    $region14: #{tpu_custom_call.1} parent=1 // pred_check
      _
    $region15: #{tpu_custom_call.1} parent=1 // pred_check_branch
      %34 = sbr.rel (0) target = $region17
    $region16: #{tpu_custom_call.1} parent=1 // pred_region
      %35 = dma.done [#allocation6], 512
    $region17: #{tpu_custom_call.1} parent=1 // pred_fallthru
      _
    %v36 = vld [vmem:[#allocation5] sm:$0xff]
    %v37 = vld [vmem:[#allocation5 + $0x8] sm:$0xff]
    %v38 = vld [vmem:[#allocation5 + $0x10] sm:$0xff]
    %v39 = vld [vmem:[#allocation5 + $0x18] sm:$0xff]
    %v40 = vld [vmem:[#allocation2] sm:$0xff]
    %v42 = vcombine.high %v40, %v40
    %v44 = vunpack.c.l.s4 1983009808
    %v45 = vunpack.c.0.s8 %v44
    %v46 = vlaneseq
    %v47 = vshrl.u32 %v46, 7
    %v48 = vsub.s32 %v45, %v47
    %v49 = vrot.slane %v40, %v48
    %v51 = vunpack.c.l.s4 1983009808
    %v52 = vunpack.c.0.s8 %v51
    %v53 = vlaneseq
    %v54 = vshrl.u32 %v53, 7
    %v55 = vsub.s32 %v52, %v54
    %v56 = vrot.slane %v42, %v55
    %v57 = vcombine.high %v49, %v49
    %v58 = vcombine.high %v56, %v56
    %63 = vmatprep.subr.mxu0 %v37
    %64 = vmatpush1.xpose.msra.mxu0 %v36
    %65 = vmatprep.subr.mxu0 0.0
    %66 = vmatpush1.xpose.msra.mxu0 0.0
    %67 = vmatprep.subr.mxu0 0.0
    %68 = vmatpush1.xpose.msra.mxu0 0.0
    %69 = vmatprep.subr.mxu0 0.0
    %70 = vmatpush1.xpose.msra.mxu0 0.0
    %71 = vmatprep.subr.mxu0 0.0
    %72 = vmatpush1.xpose.msra.mxu0 0.0
    %73 = vmatprep.subr.mxu0 0.0
    %74 = vmatpush1.xpose.msra.mxu0 0.0
    %75 = vmatprep.subr.mxu0 0.0
    %76 = vmatpush1.xpose.msra.mxu0 0.0
    %77 = vmatprep.subr.mxu0 0.0
    %78 = vmatpush1.xpose.msra.mxu0 0.0
    %79 = vmatprep.subr.mxu0 0.0
    %80 = vmatpush1.xpose.msra.mxu0 0.0
    %81 = vmatprep.subr.mxu0 0.0
    %82 = vmatpush1.xpose.msra.mxu0 0.0
    %83 = vmatprep.subr.mxu0 0.0
    %84 = vmatpush1.xpose.msra.mxu0 0.0
    %85 = vmatprep.subr.mxu0 0.0
    %86 = vmatpush1.xpose.msra.mxu0 0.0
    %87 = vmatprep.subr.mxu0 0.0
    %88 = vmatpush1.xpose.msra.mxu0 0.0
    %89 = vmatprep.subr.mxu0 0.0
    %90 = vmatpush1.xpose.msra.mxu0 0.0
    %91 = vmatprep.subr.mxu0 0.0
    %92 = vmatpush1.xpose.msra.mxu0 0.0
    %93 = vmatprep.subr.mxu0 0.0
    %94 = vmatpush1.xpose.msra.mxu0 0.0
    %95 = vmatprep.subr.mxu0 0.0
    %96 = vmatpush1.xpose.msra.mxu0 0.0
    %97 = vmatprep.subr.mxu0 0.0
    %98 = vmatpush1.xpose.msra.mxu0 0.0
    %99 = vmatprep.subr.mxu0 0.0
    %100 = vmatpush1.xpose.msra.mxu0 0.0
    %101 = vmatprep.subr.mxu0 0.0
    %102 = vmatpush1.xpose.msra.mxu0 0.0
    %103 = vmatprep.subr.mxu0 0.0
    %104 = vmatpush1.xpose.msra.mxu0 0.0
    %105 = vmatprep.subr.mxu0 0.0
    %106 = vmatpush1.xpose.msra.mxu0 0.0
    %107 = vmatprep.subr.mxu0 0.0
    %108 = vmatpush1.xpose.msra.mxu0 0.0
    %109 = vmatprep.subr.mxu0 0.0
    %110 = vmatpush1.xpose.msra.mxu0 0.0
    %111 = vmatprep.subr.mxu0 0.0
    %112 = vmatpush1.xpose.msra.mxu0 0.0
    %113 = vmatprep.subr.mxu0 0.0
    %114 = vmatpush1.xpose.msra.mxu0 0.0
    %115 = vmatprep.subr.mxu0 0.0
    %116 = vmatpush1.xpose.msra.mxu0 0.0
    %117 = vmatprep.subr.mxu0 0.0
    %118 = vmatpush1.xpose.msra.mxu0 0.0
    %119 = vmatprep.subr.mxu0 0.0
    %120 = vmatpush1.xpose.msra.mxu0 0.0
    %121 = vmatprep.subr.mxu0 0.0
    %122 = vmatpush1.xpose.msra.mxu0 0.0
    %123 = vmatprep.subr.mxu0 0.0
    %124 = vmatpush1.xpose.msra.mxu0 0.0
    %125 = vmatprep.subr.mxu0 0.0
    %126 = vmatpush1.xpose.msra.mxu0 0.0
    %127 = vmatprep.mubr.f32.mxu0 %v57
    %128 = vmatmul.mubr.f32.gmra.mrb[0].mxu0 %v49
    %v129 = vpop.f32.mrb[0].mxu0
    %v130 = vadd.f32 0.0, %v129
    %v131 = vpop.f32.mrb[0].mxu0
    %132 = vdwg.mxu0
    %133 = vmatprep.subr.mxu0 %v39
    %134 = vmatpush1.xpose.msra.mxu0 %v38
    %135 = vmatprep.subr.mxu0 0.0
    %136 = vmatpush1.xpose.msra.mxu0 0.0
    %137 = vmatprep.subr.mxu0 0.0
    %138 = vmatpush1.xpose.msra.mxu0 0.0
    %139 = vmatprep.subr.mxu0 0.0
    %140 = vmatpush1.xpose.msra.mxu0 0.0
    %141 = vmatprep.subr.mxu0 0.0
    %142 = vmatpush1.xpose.msra.mxu0 0.0
    %143 = vmatprep.subr.mxu0 0.0
    %144 = vmatpush1.xpose.msra.mxu0 0.0
    %145 = vmatprep.subr.mxu0 0.0
    %146 = vmatpush1.xpose.msra.mxu0 0.0
    %147 = vmatprep.subr.mxu0 0.0
    %148 = vmatpush1.xpose.msra.mxu0 0.0
    %149 = vmatprep.subr.mxu0 0.0
    %150 = vmatpush1.xpose.msra.mxu0 0.0
    %151 = vmatprep.subr.mxu0 0.0
    %152 = vmatpush1.xpose.msra.mxu0 0.0
    %153 = vmatprep.subr.mxu0 0.0
    %154 = vmatpush1.xpose.msra.mxu0 0.0
    %155 = vmatprep.subr.mxu0 0.0
    %156 = vmatpush1.xpose.msra.mxu0 0.0
    %157 = vmatprep.subr.mxu0 0.0
    %158 = vmatpush1.xpose.msra.mxu0 0.0
    %159 = vmatprep.subr.mxu0 0.0
    %160 = vmatpush1.xpose.msra.mxu0 0.0
    %161 = vmatprep.subr.mxu0 0.0
    %162 = vmatpush1.xpose.msra.mxu0 0.0
    %163 = vmatprep.subr.mxu0 0.0
    %164 = vmatpush1.xpose.msra.mxu0 0.0
    %165 = vmatprep.subr.mxu0 0.0
    %166 = vmatpush1.xpose.msra.mxu0 0.0
    %167 = vmatprep.subr.mxu0 0.0
    %168 = vmatpush1.xpose.msra.mxu0 0.0
    %169 = vmatprep.subr.mxu0 0.0
    %170 = vmatpush1.xpose.msra.mxu0 0.0
    %171 = vmatprep.subr.mxu0 0.0
    %172 = vmatpush1.xpose.msra.mxu0 0.0
    %173 = vmatprep.subr.mxu0 0.0
    %174 = vmatpush1.xpose.msra.mxu0 0.0
    %175 = vmatprep.subr.mxu0 0.0
    %176 = vmatpush1.xpose.msra.mxu0 0.0
    %177 = vmatprep.subr.mxu0 0.0
    %178 = vmatpush1.xpose.msra.mxu0 0.0
    %179 = vmatprep.subr.mxu0 0.0
    %180 = vmatpush1.xpose.msra.mxu0 0.0
    %181 = vmatprep.subr.mxu0 0.0
    %182 = vmatpush1.xpose.msra.mxu0 0.0
    %183 = vmatprep.subr.mxu0 0.0
    %184 = vmatpush1.xpose.msra.mxu0 0.0
    %185 = vmatprep.subr.mxu0 0.0
    %186 = vmatpush1.xpose.msra.mxu0 0.0
    %187 = vmatprep.subr.mxu0 0.0
    %188 = vmatpush1.xpose.msra.mxu0 0.0
    %189 = vmatprep.subr.mxu0 0.0
    %190 = vmatpush1.xpose.msra.mxu0 0.0
    %191 = vmatprep.subr.mxu0 0.0
    %192 = vmatpush1.xpose.msra.mxu0 0.0
    %193 = vmatprep.subr.mxu0 0.0
    %194 = vmatpush1.xpose.msra.mxu0 0.0
    %195 = vmatprep.subr.mxu0 0.0
    %196 = vmatpush1.xpose.msra.mxu0 0.0
    %197 = vmatprep.mubr.f32.mxu0 %v58
    %198 = vmatmul.mubr.f32.gmra.mrb[0].mxu0 %v56
    %v199 = vpop.f32.mrb[0].mxu0
    %v200 = vadd.f32 %v130, %v199
    %v201 = vpop.f32.mrb[0].mxu0
    %202 = vdwg.mxu0
    %v203 = vmul.f32 %v36, %v36
    %v204 = vmul.f32 %v37, %v37
    %v205 = vmul.f32 %v38, %v38
    %v206 = vmul.f32 %v39, %v39
    %207 = vmatprep.subr.mxu0 %v204
    %208 = vmatpush1.xpose.msra.mxu0 %v203
    %209 = vmatprep.subr.mxu0 0.0
    %210 = vmatpush1.xpose.msra.mxu0 0.0
    %211 = vmatprep.subr.mxu0 0.0
    %212 = vmatpush1.xpose.msra.mxu0 0.0
    %213 = vmatprep.subr.mxu0 0.0
    %214 = vmatpush1.xpose.msra.mxu0 0.0
    %215 = vmatprep.subr.mxu0 0.0
    %216 = vmatpush1.xpose.msra.mxu0 0.0
    %217 = vmatprep.subr.mxu0 0.0
    %218 = vmatpush1.xpose.msra.mxu0 0.0
    %219 = vmatprep.subr.mxu0 0.0
    %220 = vmatpush1.xpose.msra.mxu0 0.0
    %221 = vmatprep.subr.mxu0 0.0
    %222 = vmatpush1.xpose.msra.mxu0 0.0
    %223 = vmatprep.subr.mxu0 0.0
    %224 = vmatpush1.xpose.msra.mxu0 0.0
    %225 = vmatprep.subr.mxu0 0.0
    %226 = vmatpush1.xpose.msra.mxu0 0.0
    %227 = vmatprep.subr.mxu0 0.0
    %228 = vmatpush1.xpose.msra.mxu0 0.0
    %229 = vmatprep.subr.mxu0 0.0
    %230 = vmatpush1.xpose.msra.mxu0 0.0
    %231 = vmatprep.subr.mxu0 0.0
    %232 = vmatpush1.xpose.msra.mxu0 0.0
    %233 = vmatprep.subr.mxu0 0.0
    %234 = vmatpush1.xpose.msra.mxu0 0.0
    %235 = vmatprep.subr.mxu0 0.0
    %236 = vmatpush1.xpose.msra.mxu0 0.0
    %237 = vmatprep.subr.mxu0 0.0
    %238 = vmatpush1.xpose.msra.mxu0 0.0
    %239 = vmatprep.subr.mxu0 0.0
    %240 = vmatpush1.xpose.msra.mxu0 0.0
    %241 = vmatprep.subr.mxu0 0.0
    %242 = vmatpush1.xpose.msra.mxu0 0.0
    %243 = vmatprep.subr.mxu0 0.0
    %244 = vmatpush1.xpose.msra.mxu0 0.0
    %245 = vmatprep.subr.mxu0 0.0
    %246 = vmatpush1.xpose.msra.mxu0 0.0
    %247 = vmatprep.subr.mxu0 0.0
    %248 = vmatpush1.xpose.msra.mxu0 0.0
    %249 = vmatprep.subr.mxu0 0.0
    %250 = vmatpush1.xpose.msra.mxu0 0.0
    %251 = vmatprep.subr.mxu0 0.0
    %252 = vmatpush1.xpose.msra.mxu0 0.0
    %253 = vmatprep.subr.mxu0 0.0
    %254 = vmatpush1.xpose.msra.mxu0 0.0
    %255 = vmatprep.subr.mxu0 0.0
    %256 = vmatpush1.xpose.msra.mxu0 0.0
    %257 = vmatprep.subr.mxu0 0.0
    %258 = vmatpush1.xpose.msra.mxu0 0.0
    %259 = vmatprep.subr.mxu0 0.0
    %260 = vmatpush1.xpose.msra.mxu0 0.0
    %261 = vmatprep.subr.mxu0 0.0
    %262 = vmatpush1.xpose.msra.mxu0 0.0
    %263 = vmatprep.subr.mxu0 0.0
    %264 = vmatpush1.xpose.msra.mxu0 0.0
    %265 = vmatprep.subr.mxu0 0.0
    %266 = vmatpush1.xpose.msra.mxu0 0.0
    %267 = vmatprep.subr.mxu0 0.0
    %268 = vmatpush1.xpose.msra.mxu0 0.0
    %269 = vmatprep.subr.mxu0 0.0
    %270 = vmatpush1.xpose.msra.mxu0 0.0
    %271 = vmatprep.mubr.f32.mxu0 1.0
    %272 = vmatmul.mubr.f32.gmra.mrb[0].mxu0 1.0
    %v273 = vpop.f32.mrb[0].mxu0
    %v274 = vadd.f32 0.0, %v273
    %v275 = vpop.f32.mrb[0].mxu0
    %276 = vdwg.mxu0
    %277 = vmatprep.subr.mxu0 %v206
    %278 = vmatpush1.xpose.msra.mxu0 %v205
    %279 = vmatprep.subr.mxu0 0.0
    %280 = vmatpush1.xpose.msra.mxu0 0.0
    %281 = vmatprep.subr.mxu0 0.0
    %282 = vmatpush1.xpose.msra.mxu0 0.0
    %283 = vmatprep.subr.mxu0 0.0
    %284 = vmatpush1.xpose.msra.mxu0 0.0
    %285 = vmatprep.subr.mxu0 0.0
    %286 = vmatpush1.xpose.msra.mxu0 0.0
    %287 = vmatprep.subr.mxu0 0.0
    %288 = vmatpush1.xpose.msra.mxu0 0.0
    %289 = vmatprep.subr.mxu0 0.0
    %290 = vmatpush1.xpose.msra.mxu0 0.0
    %291 = vmatprep.subr.mxu0 0.0
    %292 = vmatpush1.xpose.msra.mxu0 0.0
    %293 = vmatprep.subr.mxu0 0.0
    %294 = vmatpush1.xpose.msra.mxu0 0.0
    %295 = vmatprep.subr.mxu0 0.0
    %296 = vmatpush1.xpose.msra.mxu0 0.0
    %297 = vmatprep.subr.mxu0 0.0
    %298 = vmatpush1.xpose.msra.mxu0 0.0
    %299 = vmatprep.subr.mxu0 0.0
    %300 = vmatpush1.xpose.msra.mxu0 0.0
    %301 = vmatprep.subr.mxu0 0.0
    %302 = vmatpush1.xpose.msra.mxu0 0.0
    %303 = vmatprep.subr.mxu0 0.0
    %304 = vmatpush1.xpose.msra.mxu0 0.0
    %305 = vmatprep.subr.mxu0 0.0
    %306 = vmatpush1.xpose.msra.mxu0 0.0
    %307 = vmatprep.subr.mxu0 0.0
    %308 = vmatpush1.xpose.msra.mxu0 0.0
    %309 = vmatprep.subr.mxu0 0.0
    %310 = vmatpush1.xpose.msra.mxu0 0.0
    %311 = vmatprep.subr.mxu0 0.0
    %312 = vmatpush1.xpose.msra.mxu0 0.0
    %313 = vmatprep.subr.mxu0 0.0
    %314 = vmatpush1.xpose.msra.mxu0 0.0
    %315 = vmatprep.subr.mxu0 0.0
    %316 = vmatpush1.xpose.msra.mxu0 0.0
    %317 = vmatprep.subr.mxu0 0.0
    %318 = vmatpush1.xpose.msra.mxu0 0.0
    %319 = vmatprep.subr.mxu0 0.0
    %320 = vmatpush1.xpose.msra.mxu0 0.0
    %321 = vmatprep.subr.mxu0 0.0
    %322 = vmatpush1.xpose.msra.mxu0 0.0
    %323 = vmatprep.subr.mxu0 0.0
    %324 = vmatpush1.xpose.msra.mxu0 0.0
    %325 = vmatprep.subr.mxu0 0.0
    %326 = vmatpush1.xpose.msra.mxu0 0.0
    %327 = vmatprep.subr.mxu0 0.0
    %328 = vmatpush1.xpose.msra.mxu0 0.0
    %329 = vmatprep.subr.mxu0 0.0
    %330 = vmatpush1.xpose.msra.mxu0 0.0
    %331 = vmatprep.subr.mxu0 0.0
    %332 = vmatpush1.xpose.msra.mxu0 0.0
    %333 = vmatprep.subr.mxu0 0.0
    %334 = vmatpush1.xpose.msra.mxu0 0.0
    %335 = vmatprep.subr.mxu0 0.0
    %336 = vmatpush1.xpose.msra.mxu0 0.0
    %337 = vmatprep.subr.mxu0 0.0
    %338 = vmatpush1.xpose.msra.mxu0 0.0
    %339 = vmatprep.subr.mxu0 0.0
    %340 = vmatpush1.xpose.msra.mxu0 0.0
    %341 = vmatprep.mubr.f32.mxu0 1.0
    %342 = vmatmul.mubr.f32.gmra.mrb[0].mxu0 1.0
    %v343 = vpop.f32.mrb[0].mxu0
    %v344 = vadd.f32 %v274, %v343
    %v345 = vpop.f32.mrb[0].mxu0
    %346 = vdwg.mxu0
    %v347 = vrsqrt.pop %v344
    %v348 = vlaneseq
    %v349 = vshrl.u32 %v348, 7
    %v350 = vsub.s32 0, %v349
    %v351 = vrot.slane %v347, %v350
    %v352 = vmul.f32 %v200, %v351
    %vm353 = vcmask 58368
    %354 = vst.msk [vmem:[#allocation7] sm:$0x3] %vm353, %v352
    // Predicated region
    $region18: #{tpu_custom_call.1} parent=1 // pred_check
      _
    $region19: #{tpu_custom_call.1} parent=1 // pred_check_branch
      %356 = sbr.rel (0) target = $region21
    $region20: #{tpu_custom_call.1} parent=1 // pred_region
      %s358 = ssub.s32 32, 32
      %359 = vsyncadd [#allocation4], %s358
      %s361 = sshll.u32 [#allocation7], 4
      %s362 = int_to_ptr.vmem [resolvable:$true] %s361
      %364 = dma.vmem_to_hbm [thread:$0]  %s362, 32, %s2, [#allocation4]
    $region21: #{tpu_custom_call.1} parent=1 // pred_fallthru
      _
    // Predicated region
    $region22: #{tpu_custom_call.1} parent=1 // pred_check
      _
    $region23: #{tpu_custom_call.1} parent=1 // pred_check_branch
      %366 = sbr.rel (0) target = $region25
    $region24: #{tpu_custom_call.1} parent=1 // pred_region
      %367 = dma.done [#allocation4], 32
    $region25: #{tpu_custom_call.1} parent=1 // pred_fallthru
      _
    %368 = vsyncpa [#allocation3], 1
    %369 = vsyncpa [#allocation6], 1
    %370 = vsyncpa [#allocation4], 1

</llo_original>
